<compile_context>
chip_gen: v7x
topology: tpu7x:2x2x1
jax: 0.10.0
libtpu: 0.0.40
codegen_flags: <defaults>
</compile_context>

<pallas_src>
import functools

import jax
import jax.numpy as jnp
from jax import lax
from jax.experimental import pallas as pl
from jax.experimental.pallas import tpu as pltpu


def _upsample_conv_kernel(x_ref, w_ref, b_ref, o_ref):
    # x_ref: (TB, C_in, L) f32
    # w_ref: (C_out, 3*C_in) f32 or bf16   == [W_k0 | W_k1 | W_k2]
    # b_ref: (C_out, 1) f32
    # o_ref: (TB, C_out, 2L) ; [..., :L] = even output phase, [..., L:] = odd
    TB, C_in, L = x_ref.shape

    x = x_ref[...]
    pos = lax.broadcasted_iota(jnp.int32, (TB, C_in, L), 2)

    # 2-tap linear upsample (scale=2, align_corners=False), VPU + XLU only:
    #   even[m] = 0.75*x[m] + 0.25*x[m-1]   (edge replicated)
    #   odd [m] = 0.75*x[m] + 0.25*x[m+1]   (edge replicated)
    x_prev = jnp.where(pos == 0, x, pltpu.roll(x, 1, 2))
    x_next = jnp.where(pos == L - 1, x, pltpu.roll(x, L - 1, 2))
    even = 0.75 * x + 0.25 * x_prev
    odd = 0.75 * x + 0.25 * x_next

    # Conv (k=3, zero padding=1) in polyphase form:
    #   y[2m]   = W0 @ odd[m-1] + W1 @ even[m] + W2 @ odd[m]     (odd[-1]  := 0)
    #   y[2m+1] = W0 @ even[m]  + W1 @ odd[m]  + W2 @ even[m+1]  (even[L]  := 0)
    odd_m1 = jnp.where(pos == 0, 0.0, pltpu.roll(odd, 1, 2))
    even_p1 = jnp.where(pos == L - 1, 0.0, pltpu.roll(even, L - 1, 2))

    # im2col-style operand: contraction dim = 3*C_in, lanes = [even | odd] phases.
    ops_e = jnp.concatenate([odd_m1, even, odd], axis=1)     # (TB, 3*C_in, L)
    ops_o = jnp.concatenate([even, odd, even_p1], axis=1)    # (TB, 3*C_in, L)
    ops = jnp.concatenate([ops_e, ops_o], axis=2)            # (TB, 3*C_in, 2L)
    ops = ops.astype(w_ref.dtype)                            # bf16 path (f32 acc below)

    w = w_ref[...]
    bias = b_ref[...]
    for tb in range(TB):                                     # static unroll, TB small
        acc = jnp.dot(w, ops[tb], preferred_element_type=jnp.float32)  # (C_out, 2L)
        o_ref[tb] = (acc + bias).astype(o_ref.dtype)


@functools.partial(jax.jit, static_argnames=("use_bf16",))
def upsample1d_layer(x, w, b, *, use_bf16=True):
    """Fused linear x2 upsample + Conv1d(kernel_size=3, padding=1).

    x: (N, C_in, L) f32 ; w: (C_out, C_in, 3) f32 ; b: (C_out,) f32
    returns: (N, C_out, 2L) in x.dtype.
    """
    N, C_in, L = x.shape
    C_out, C_in_w, K = w.shape
    assert C_in_w == C_in
    assert K == 3, "implements the module defaults kernel_size=3, padding=1"
    # TODO(synk): general kernel_size / padding (module defaults are 3 / 1).
    Lo = 2 * L

    # Fold the 3 conv taps into one (C_out, 3*C_in) matrix, matching the
    # operand stacking order inside the kernel.
    wcat = jnp.concatenate([w[:, :, 0], w[:, :, 1], w[:, :, 2]], axis=1)
    if use_bf16:
        wcat = wcat.astype(jnp.bfloat16)      # MXU-native inputs, f32 accumulation
    b2 = b.reshape(C_out, 1).astype(jnp.float32)

    # Batch blocking: amortize per-grid-step overhead while keeping the block's
    # VMEM footprint (roughly a handful of f32 copies of the x block) small.
    ops_row_bytes = 3 * C_in * Lo * 4
    tb_cap = max(1, (4 << 20) // max(1, ops_row_bytes))
    TB = max(1, min(N, 8, tb_cap))
    Np = ((N + TB - 1) // TB) * TB
    xp = x if Np == N else jnp.pad(x, ((0, Np - N), (0, 0), (0, 0)))

    out = pl.pallas_call(
        _upsample_conv_kernel,
        out_shape=jax.ShapeDtypeStruct((Np, C_out, Lo), x.dtype),
        grid=(Np // TB,),
        in_specs=[
            pl.BlockSpec((TB, C_in, L), lambda i: (i, 0, 0)),
            pl.BlockSpec((C_out, 3 * C_in), lambda i: (0, 0)),
            pl.BlockSpec((C_out, 1), lambda i: (0, 0)),
        ],
        out_specs=pl.BlockSpec((TB, C_out, Lo), lambda i: (i, 0, 0)),
        compiler_params=pltpu.CompilerParams(
            dimension_semantics=("parallel",)),
    )(xp, wcat, b2)

    out = out[:N]
    # Phase-blocked -> interleaved: y[..., 2m+p] = out[..., p*L + m].
    # (wrapper-side layout plumbing; the kernel stores stay lane-dense)
    return out.reshape(N, C_out, 2, L).swapaxes(2, 3).reshape(N, C_out, Lo)


def _reference(x, w, b):
    """Pure-JAX reference: gather-based linear upsample + lax conv."""
    N, C_in, L = x.shape
    j = jnp.arange(2 * L)
    src = jnp.maximum(0.5 * (j + 0.5) - 0.5, 0.0)
    i0 = jnp.minimum(jnp.floor(src).astype(jnp.int32), L - 1)
    i1 = jnp.minimum(i0 + 1, L - 1)
    lam = src - i0.astype(jnp.float32)
    x_up = x[..., i0] * (1.0 - lam) + x[..., i1] * lam       # (N, C_in, 2L)
    y = lax.conv_general_dilated(
        x_up, w, window_strides=(1,), padding=[(1, 1)],
        dimension_numbers=("NCH", "OIH", "NCH"))
    return y + b[None, :, None]


if __name__ == "__main__":
    key = jax.random.PRNGKey(0)
    kx, kw, kb = jax.random.split(key, 3)

    N, C_in, C_out, L, K = 2, 4, 8, 16, 3

    x = jax.random.normal(kx, (N, C_in, L), jnp.float32)
    fan_in = C_in * K
    bound = 1.0 / (fan_in ** 0.5)
    w = jax.random.uniform(kw, (C_out, C_in, K), jnp.float32, -bound, bound)
    b = jax.random.uniform(kb, (C_out,), jnp.float32, -bound, bound)

    ref = _reference(x, w, b)

    # f32 path: bit-faithful to the PyTorch module semantics.
    out_f32 = jax.block_until_ready(upsample1d_layer(x, w, b, use_bf16=False))
    assert out_f32.shape == (N, C_out, 2 * L), out_f32.shape
    assert jnp.allclose(out_f32, ref, atol=1e-5, rtol=1e-5), float(
        jnp.max(jnp.abs(out_f32 - ref)))

    # bf16-matmul path (f32 accumulation): the recommended perf configuration.
    out_bf16 = jax.block_until_ready(upsample1d_layer(x, w, b, use_bf16=True))
    assert jnp.allclose(out_bf16, ref, atol=5e-2, rtol=5e-2), float(
        jnp.max(jnp.abs(out_bf16 - ref)))

    print("KERNEL_OK")
</pallas_src>

<mosaic_0001>
module attributes {stable_mosaic.version = 11 : i64} {
  func.func @_upsample_conv_kernel(%arg0: i32, %arg1: memref<2x4x16xf32, #tpu.memory_space<vmem>>, %arg2: memref<8x12xf32, #tpu.memory_space<vmem>>, %arg3: memref<8x1xf32, #tpu.memory_space<vmem>>, %arg4: memref<2x8x32xf32, #tpu.memory_space<vmem>>) attributes {dimension_semantics = [#tpu.dimension_semantics<parallel>], iteration_bounds = array<i64: 1>, scalar_prefetch = 0 : i64, scratch_operands = 0 : i64, tpu.core_type = #tpu.core_type<tc>, window_params = [{transform_indices = @transform_0, window_bounds = array<i64: 2, 4, 16>}, {pipeline_mode = #tpu.pipeline_mode<synchronous>, transform_indices = @transform_1, window_bounds = array<i64: 8, 12>}, {pipeline_mode = #tpu.pipeline_mode<synchronous>, transform_indices = @transform_2, window_bounds = array<i64: 8, 1>}, {transform_indices = @transform_3, window_bounds = array<i64: 2, 8, 32>}]} {
    %c0 = arith.constant 0 : index
    %c0_0 = arith.constant 0 : index
    %c0_1 = arith.constant 0 : index
    %0 = vector.load %arg1[%c0, %c0_0, %c0_1] : memref<2x4x16xf32, #tpu.memory_space<vmem>>, vector<2x4x16xf32>
    %1 = tpu.iota {dimensions = array<i32: 2>} : vector<2x4x16xi32>
    %c0_i32 = arith.constant 0 : i32
    %2 = vector.broadcast %c0_i32 : i32 to vector<2x4x16xi32>
    %3 = arith.cmpi eq, %1, %2 : vector<2x4x16xi32>
    %c1_i32 = arith.constant 1 : i32
    %4 = tpu.dynamic_rotate %0 by %c1_i32 dim 2 : vector<2x4x16xf32>, i32 -> vector<2x4x16xf32>
    %5 = arith.select %3, %0, %4 : vector<2x4x16xi1>, vector<2x4x16xf32>
    %c15_i32 = arith.constant 15 : i32
    %6 = vector.broadcast %c15_i32 : i32 to vector<2x4x16xi32>
    %7 = arith.cmpi eq, %1, %6 : vector<2x4x16xi32>
    %c15_i32_2 = arith.constant 15 : i32
    %8 = tpu.dynamic_rotate %0 by %c15_i32_2 dim 2 : vector<2x4x16xf32>, i32 -> vector<2x4x16xf32>
    %9 = arith.select %7, %0, %8 : vector<2x4x16xi1>, vector<2x4x16xf32>
    %cst = arith.constant 7.500000e-01 : f32
    %10 = vector.broadcast %cst : f32 to vector<2x4x16xf32>
    %11 = arith.mulf %10, %0 : vector<2x4x16xf32>
    %cst_3 = arith.constant 2.500000e-01 : f32
    %12 = vector.broadcast %cst_3 : f32 to vector<2x4x16xf32>
    %13 = arith.mulf %12, %5 : vector<2x4x16xf32>
    %14 = arith.addf %11, %13 : vector<2x4x16xf32>
    %cst_4 = arith.constant 7.500000e-01 : f32
    %15 = vector.broadcast %cst_4 : f32 to vector<2x4x16xf32>
    %16 = arith.mulf %15, %0 : vector<2x4x16xf32>
    %cst_5 = arith.constant 2.500000e-01 : f32
    %17 = vector.broadcast %cst_5 : f32 to vector<2x4x16xf32>
    %18 = arith.mulf %17, %9 : vector<2x4x16xf32>
    %19 = arith.addf %16, %18 : vector<2x4x16xf32>
    %c0_i32_6 = arith.constant 0 : i32
    %20 = vector.broadcast %c0_i32_6 : i32 to vector<2x4x16xi32>
    %21 = arith.cmpi eq, %1, %20 : vector<2x4x16xi32>
    %c1_i32_7 = arith.constant 1 : i32
    %22 = tpu.dynamic_rotate %19 by %c1_i32_7 dim 2 : vector<2x4x16xf32>, i32 -> vector<2x4x16xf32>
    %cst_8 = arith.constant 0.000000e+00 : f32
    %23 = vector.broadcast %cst_8 : f32 to vector<2x4x16xf32>
    %24 = arith.select %21, %23, %22 : vector<2x4x16xi1>, vector<2x4x16xf32>
    %c15_i32_9 = arith.constant 15 : i32
    %25 = vector.broadcast %c15_i32_9 : i32 to vector<2x4x16xi32>
    %26 = arith.cmpi eq, %1, %25 : vector<2x4x16xi32>
    %c15_i32_10 = arith.constant 15 : i32
    %27 = tpu.dynamic_rotate %14 by %c15_i32_10 dim 2 : vector<2x4x16xf32>, i32 -> vector<2x4x16xf32>
    %cst_11 = arith.constant 0.000000e+00 : f32
    %28 = vector.broadcast %cst_11 : f32 to vector<2x4x16xf32>
    %29 = arith.select %26, %28, %27 : vector<2x4x16xi1>, vector<2x4x16xf32>
    %30 = tpu.concatenate %24, %14, %19 in 1 : vector<2x4x16xf32>, vector<2x4x16xf32>, vector<2x4x16xf32> -> vector<2x12x16xf32>
    %31 = tpu.concatenate %14, %19, %29 in 1 : vector<2x4x16xf32>, vector<2x4x16xf32>, vector<2x4x16xf32> -> vector<2x12x16xf32>
    %32 = tpu.concatenate %30, %31 in 2 : vector<2x12x16xf32>, vector<2x12x16xf32> -> vector<2x12x32xf32>
    %c0_12 = arith.constant 0 : index
    %c0_13 = arith.constant 0 : index
    %33 = vector.load %arg2[%c0_12, %c0_13] : memref<8x12xf32, #tpu.memory_space<vmem>>, vector<8x12xf32>
    %c0_14 = arith.constant 0 : index
    %c0_15 = arith.constant 0 : index
    %34 = vector.load %arg3[%c0_14, %c0_15] : memref<8x1xf32, #tpu.memory_space<vmem>>, vector<8x1xf32>
    %35 = vector.extract_strided_slice %32 {offsets = [0, 0, 0], sizes = [1, 12, 32], strides = [1, 1, 1]} : vector<2x12x32xf32> to vector<1x12x32xf32>
    %36 = vector.shape_cast %35 : vector<1x12x32xf32> to vector<12x32xf32>
    %cst_16 = arith.constant dense<0.000000e+00> : vector<8x32xf32>
    %37 = tpu.matmul %33, %36, %cst_16 {dimension_numbers = #tpu.dot_dimension_numbers<[1], [0], [0], [1], [0, 0, 1, 1], [], []>} : vector<8x12xf32>, vector<12x32xf32>, vector<8x32xf32> -> vector<8x32xf32>
    %38 = vector.broadcast %34 : vector<8x1xf32> to vector<8x32xf32>
    %39 = arith.addf %37, %38 : vector<8x32xf32>
    %c0_17 = arith.constant 0 : index
    %c0_18 = arith.constant 0 : index
    %c0_19 = arith.constant 0 : index
    %40 = vector.load %arg4[%c0_17, %c0_18, %c0_19] : memref<2x8x32xf32, #tpu.memory_space<vmem>>, vector<1x8x32xf32>
    %41 = vector.shape_cast %40 : vector<1x8x32xf32> to vector<8x32xf32>
    %42 = vector.shape_cast %39 : vector<8x32xf32> to vector<1x8x32xf32>
    tpu.vector_store %arg4[%c0_17, %c0_18, %c0_19], %42 {strides = array<i32>} : memref<2x8x32xf32, #tpu.memory_space<vmem>>, vector<1x8x32xf32>,
    %43 = vector.extract_strided_slice %32 {offsets = [1, 0, 0], sizes = [1, 12, 32], strides = [1, 1, 1]} : vector<2x12x32xf32> to vector<1x12x32xf32>
    %44 = vector.shape_cast %43 : vector<1x12x32xf32> to vector<12x32xf32>
    %cst_20 = arith.constant dense<0.000000e+00> : vector<8x32xf32>
    %45 = tpu.matmul %33, %44, %cst_20 {dimension_numbers = #tpu.dot_dimension_numbers<[1], [0], [0], [1], [0, 0, 1, 1], [], []>} : vector<8x12xf32>, vector<12x32xf32>, vector<8x32xf32> -> vector<8x32xf32>
    %46 = vector.broadcast %34 : vector<8x1xf32> to vector<8x32xf32>
    %47 = arith.addf %45, %46 : vector<8x32xf32>
    %c1 = arith.constant 1 : index
    %c0_21 = arith.constant 0 : index
    %c0_22 = arith.constant 0 : index
    %48 = vector.load %arg4[%c1, %c0_21, %c0_22] : memref<2x8x32xf32, #tpu.memory_space<vmem>>, vector<1x8x32xf32>
    %49 = vector.shape_cast %48 : vector<1x8x32xf32> to vector<8x32xf32>
    %50 = vector.shape_cast %47 : vector<8x32xf32> to vector<1x8x32xf32>
    tpu.vector_store %arg4[%c1, %c0_21, %c0_22], %50 {strides = array<i32>} : memref<2x8x32xf32, #tpu.memory_space<vmem>>, vector<1x8x32xf32>,
    return
  }
  func.func @transform_0(%arg0: i32) -> (i32, i32, i32) {
    %c0_i32 = arith.constant 0 : i32
    %c0_i32_0 = arith.constant 0 : i32
    %c0_i32_1 = arith.constant 0 : i32
    return %arg0, %c0_i32, %c0_i32_0 : i32, i32, i32
  }
  func.func @transform_1(%arg0: i32) -> (i32, i32) {
    %c0_i32 = arith.constant 0 : i32
    %c0_i32_0 = arith.constant 0 : i32
    %c0_i32_1 = arith.constant 0 : i32
    return %c0_i32, %c0_i32_0 : i32, i32
  }
  func.func @transform_2(%arg0: i32) -> (i32, i32) {
    %c0_i32 = arith.constant 0 : i32
    %c0_i32_0 = arith.constant 0 : i32
    %c0_i32_1 = arith.constant 0 : i32
    return %c0_i32, %c0_i32_0 : i32, i32
  }
  func.func @transform_3(%arg0: i32) -> (i32, i32, i32) {
    %c0_i32 = arith.constant 0 : i32
    %c0_i32_0 = arith.constant 0 : i32
    %c0_i32_1 = arith.constant 0 : i32
    return %arg0, %c0_i32, %c0_i32_0 : i32, i32, i32
  }
}

</mosaic_0001>

<llo_original>
// kernel: upsample1d_layer.1
$region0: #{upsample1d_layer.1}
  #allocation0 [shape = 'u32[]', space=smem, size = 0x4, offset = 0x4, fixed_abs, tag = 'smem constant byte address 0x4 - core index']
  #allocation1 [shape = 'u32[144,128]{1,0:T(1,128)}', space=vmem, size = 0x12000, scoped, tag = 'internal scratch']
  %s0 = inlined_call_operand.vmem [shape: f32[2,4,16], index: 0, kind: input, shape index: {}]
  %s1 = inlined_call_operand.vmem [shape: f32[8,12], index: 1, kind: input, shape index: {}]
  %s2 = inlined_call_operand.vmem [shape: f32[8,1], index: 2, kind: input, shape index: {}]
  %s3 = inlined_call_operand.vmem [shape: f32[2,8,32], index: 3, kind: output, shape index: {}]
  %s4 = sld [smem:[#allocation0]]
  $region22: #{upsample1d_layer.1} parent=0
    _
  %s6 = ssub.s32 1, %s4
  %s7 = scalar_select 0, %s6, %s4
  // Predicated region
  $region2: #{upsample1d_layer.1} parent=0 // pred_check
    _
  $region3: #{upsample1d_layer.1} parent=0 // pred_check_branch
    %9 = sbr.rel (0) target = $region5
  $region4: #{upsample1d_layer.1} parent=0 // pred_region
    _
  $region5: #{upsample1d_layer.1} parent=0 // pred_fallthru
    _
  // Predicated region
  $region6: #{upsample1d_layer.1} parent=0 // pred_check
    _
  $region7: #{upsample1d_layer.1} parent=0 // pred_check_branch
    %11 = sbr.rel (0) target = $region9
  $region8: #{upsample1d_layer.1} parent=0 // pred_region
    _
  $region9: #{upsample1d_layer.1} parent=0 // pred_fallthru
    _
  // Predicated region
  $region10: #{upsample1d_layer.1} parent=0 // pred_check
    _
  $region11: #{upsample1d_layer.1} parent=0 // pred_check_branch
    %13 = sbr.rel (0) target = $region13
  $region12: #{upsample1d_layer.1} parent=0 // pred_region
    _
  $region13: #{upsample1d_layer.1} parent=0 // pred_fallthru
    _
  %v14 = vld [vmem:[%s0] sm:$0xf]
  %v15 = vld [vmem:[%s0 + $0x4] sm:$0xf]
  %v16 = vlaneseq
  %v17 = vand.u32 %v16, 127
  %vm18 = vcmp.eq.s32.totalorder %v17, 0
  %vm19 = vcmask 1047680
  %20 = vrot.lane.b32.xlu0 %v14, 16
  %v21 = vpop.permute.xlu0 %20
  %v22 = vsel %vm19, %v21, %v14
  %23 = vrot.lane.b32.xlu0 %v15, 16
  %v24 = vpop.permute.xlu0 %23
  %v25 = vsel %vm19, %v24, %v15
  %26 = vrot.lane.b32.xlu0 %v22, 16
  %v27 = vpop.permute.xlu0 %26
  %28 = vrot.lane.b32.xlu0 %v25, 16
  %v29 = vpop.permute.xlu0 %28
  %v30 = vsel %vm19, %v27, %v14
  %v31 = vsel %vm19, %v29, %v15
  %34 = vrot.lane.b32.xlu0 %v30, 113
  %v35 = vpop.permute.xlu0 %34
  %36 = vrot.lane.b32.xlu0 %v31, 113
  %v37 = vpop.permute.xlu0 %36
  %v40 = vsel %vm18, %v14, %v35
  %v41 = vsel %vm18, %v15, %v37
  %vm42 = vcmp.eq.s32.totalorder %v17, 15
  %43 = vrot.lane.b32.xlu0 %v30, 127
  %v44 = vpop.permute.xlu0 %43
  %45 = vrot.lane.b32.xlu0 %v31, 127
  %v46 = vpop.permute.xlu0 %45
  %v49 = vsel %vm42, %v14, %v44
  %v50 = vsel %vm42, %v15, %v46
  %v51 = vmul.f32 %v14, 0.75
  %v52 = vmul.f32 %v15, 0.75
  %v53 = vmul.f32 %v40, 0.25
  %v54 = vmul.f32 %v41, 0.25
  %v55 = vadd.f32 %v51, %v53
  %v56 = vadd.f32 %v52, %v54
  %v57 = vmul.f32 %v49, 0.25
  %v58 = vmul.f32 %v50, 0.25
  %v59 = vadd.f32 %v51, %v57
  %v60 = vadd.f32 %v52, %v58
  %61 = vrot.lane.b32.xlu0 %v59, 16
  %v62 = vpop.permute.xlu0 %61
  %v63 = vsel %vm19, %v62, %v59
  %64 = vrot.lane.b32.xlu0 %v60, 16
  %v65 = vpop.permute.xlu0 %64
  %v66 = vsel %vm19, %v65, %v60
  %67 = vrot.lane.b32.xlu0 %v63, 16
  %v68 = vpop.permute.xlu0 %67
  %69 = vrot.lane.b32.xlu0 %v66, 16
  %v70 = vpop.permute.xlu0 %69
  %v71 = vsel %vm19, %v68, %v59
  %v72 = vsel %vm19, %v70, %v60
  %75 = vrot.lane.b32.xlu0 %v71, 113
  %v76 = vpop.permute.xlu0 %75
  %77 = vrot.lane.b32.xlu0 %v72, 113
  %v78 = vpop.permute.xlu0 %77
  %v81 = vsel %vm18, 0.0, %v76
  %v82 = vsel %vm18, 0.0, %v78
  %83 = vrot.lane.b32.xlu0 %v55, 16
  %v84 = vpop.permute.xlu0 %83
  %v85 = vsel %vm19, %v84, %v55
  %86 = vrot.lane.b32.xlu0 %v56, 16
  %v87 = vpop.permute.xlu0 %86
  %v88 = vsel %vm19, %v87, %v56
  %89 = vrot.lane.b32.xlu0 %v85, 16
  %v90 = vpop.permute.xlu0 %89
  %91 = vrot.lane.b32.xlu0 %v88, 16
  %v92 = vpop.permute.xlu0 %91
  %v93 = vsel %vm19, %v90, %v55
  %v94 = vsel %vm19, %v92, %v56
  %97 = vrot.lane.b32.xlu0 %v93, 127
  %v98 = vpop.permute.xlu0 %97
  %99 = vrot.lane.b32.xlu0 %v94, 127
  %v100 = vpop.permute.xlu0 %99
  %v103 = vsel %vm42, 0.0, %v98
  %v104 = vsel %vm42, 0.0, %v100
  %v107 = vrot.slane %v55, 4
  %v108 = vrot.slane %v56, 4
  %vm111 = vcmask 1043456
  %v112 = vsel %vm111, %v81, %v107
  %v113 = vsel %vm111, %v82, %v108
  %v116 = vrot.slane %v59, 4
  %v117 = vrot.slane %v60, 4
  %v120 = vsel %vm111, %v55, %v116
  %v121 = vsel %vm111, %v56, %v117
  %126 = vrot.lane.b32.xlu0 %v120, 16
  %v127 = vpop.permute.xlu0 %126
  %128 = vrot.lane.b32.xlu0 %v103, 16
  %v129 = vpop.permute.xlu0 %128
  %130 = vrot.lane.b32.xlu0 %v121, 16
  %v131 = vpop.permute.xlu0 %130
  %132 = vrot.lane.b32.xlu0 %v104, 16
  %v133 = vpop.permute.xlu0 %132
  %vm138 = vcmask 130048
  %v139 = vsel %vm138, %v112, %v127
  %v140 = vsel %vm138, %v59, %v129
  %v141 = vsel %vm138, %v113, %v131
  %v142 = vsel %vm138, %v60, %v133
  %v143 = vld [vmem:[%s1] sm:$0xff]
  %v144 = vld [vmem:[%s2] sm:$0xff]
  %146 = vset.pattern.permute.xlu0 0
  %147 = vperm.xlu0 %146, %v144
  %v148 = vpop.permute.xlu0 %147
  %vm150 = vcmask 97280
  %v152 = vsel %vm150, %v143, 0
  %v155 = vsel %vm111, %v140, 0
  %157 = vmatprep.subr.mxu0 0.0
  %158 = vmatpush1.msra.mxu0 %v139
  %159 = vmatprep.subr.mxu0 0.0
  %160 = vmatpush1.msra.mxu0 %v155
  %161 = vmatprep.subr.mxu0 0.0
  %162 = vmatpush1.msra.mxu0 0.0
  %163 = vmatprep.subr.mxu0 0.0
  %164 = vmatpush1.msra.mxu0 0.0
  %165 = vmatprep.subr.mxu0 0.0
  %166 = vmatpush1.msra.mxu0 0.0
  %167 = vmatprep.subr.mxu0 0.0
  %168 = vmatpush1.msra.mxu0 0.0
  %169 = vmatprep.subr.mxu0 0.0
  %170 = vmatpush1.msra.mxu0 0.0
  %171 = vmatprep.subr.mxu0 0.0
  %172 = vmatpush1.msra.mxu0 0.0
  %173 = vmatprep.subr.mxu0 0.0
  %174 = vmatpush1.msra.mxu0 0.0
  %175 = vmatprep.subr.mxu0 0.0
  %176 = vmatpush1.msra.mxu0 0.0
  %177 = vmatprep.subr.mxu0 0.0
  %178 = vmatpush1.msra.mxu0 0.0
  %179 = vmatprep.subr.mxu0 0.0
  %180 = vmatpush1.msra.mxu0 0.0
  %181 = vmatprep.subr.mxu0 0.0
  %182 = vmatpush1.msra.mxu0 0.0
  %183 = vmatprep.subr.mxu0 0.0
  %184 = vmatpush1.msra.mxu0 0.0
  %185 = vmatprep.subr.mxu0 0.0
  %186 = vmatpush1.msra.mxu0 0.0
  %187 = vmatprep.subr.mxu0 0.0
  %188 = vmatpush1.msra.mxu0 0.0
  %189 = vmatprep.subr.mxu0 0.0
  %190 = vmatpush1.msra.mxu0 0.0
  %191 = vmatprep.subr.mxu0 0.0
  %192 = vmatpush1.msra.mxu0 0.0
  %193 = vmatprep.subr.mxu0 0.0
  %194 = vmatpush1.msra.mxu0 0.0
  %195 = vmatprep.subr.mxu0 0.0
  %196 = vmatpush1.msra.mxu0 0.0
  %197 = vmatprep.subr.mxu0 0.0
  %198 = vmatpush1.msra.mxu0 0.0
  %199 = vmatprep.subr.mxu0 0.0
  %200 = vmatpush1.msra.mxu0 0.0
  %201 = vmatprep.subr.mxu0 0.0
  %202 = vmatpush1.msra.mxu0 0.0
  %203 = vmatprep.subr.mxu0 0.0
  %204 = vmatpush1.msra.mxu0 0.0
  %205 = vmatprep.subr.mxu0 0.0
  %206 = vmatpush1.msra.mxu0 0.0
  %207 = vmatprep.subr.mxu0 0.0
  %208 = vmatpush1.msra.mxu0 0.0
  %209 = vmatprep.subr.mxu0 0.0
  %210 = vmatpush1.msra.mxu0 0.0
  %211 = vmatprep.subr.mxu0 0.0
  %212 = vmatpush1.msra.mxu0 0.0
  %213 = vmatprep.subr.mxu0 0.0
  %214 = vmatpush1.msra.mxu0 0.0
  %215 = vmatprep.subr.mxu0 0.0
  %216 = vmatpush1.msra.mxu0 0.0
  %217 = vmatprep.subr.mxu0 0.0
  %218 = vmatpush1.msra.mxu0 0.0
  %219 = vmatprep.subr.mxu0 0.0
  %220 = vmatpush1.msra.mxu0 0.0
  %221 = vmatprep.mubr.f32.mxu0 0.0
  %222 = vmatmul.mubr.f32.gmra.mrb[0].mxu0 %v152
  %v223 = vpop.f32.mrb[0].mxu0
  %v224 = vadd.f32 %v148, %v223
  %v225 = vpop.f32.mrb[0].mxu0
  %226 = vdwg.mxu0
  %vm227 = vcmask 261120
  %228 = vst.msk [vmem:[%s3] sm:$0xff] %vm227, %v224
  %v230 = vsel %vm111, %v142, 0
  %232 = vmatprep.subr.mxu0 0.0
  %233 = vmatpush1.msra.mxu0 %v141
  %234 = vmatprep.subr.mxu0 0.0
  %235 = vmatpush1.msra.mxu0 %v230
  %236 = vmatprep.subr.mxu0 0.0
  %237 = vmatpush1.msra.mxu0 0.0
  %238 = vmatprep.subr.mxu0 0.0
  %239 = vmatpush1.msra.mxu0 0.0
  %240 = vmatprep.subr.mxu0 0.0
  %241 = vmatpush1.msra.mxu0 0.0
  %242 = vmatprep.subr.mxu0 0.0
  %243 = vmatpush1.msra.mxu0 0.0
  %244 = vmatprep.subr.mxu0 0.0
  %245 = vmatpush1.msra.mxu0 0.0
  %246 = vmatprep.subr.mxu0 0.0
  %247 = vmatpush1.msra.mxu0 0.0
  %248 = vmatprep.subr.mxu0 0.0
  %249 = vmatpush1.msra.mxu0 0.0
  %250 = vmatprep.subr.mxu0 0.0
  %251 = vmatpush1.msra.mxu0 0.0
  %252 = vmatprep.subr.mxu0 0.0
  %253 = vmatpush1.msra.mxu0 0.0
  %254 = vmatprep.subr.mxu0 0.0
  %255 = vmatpush1.msra.mxu0 0.0
  %256 = vmatprep.subr.mxu0 0.0
  %257 = vmatpush1.msra.mxu0 0.0
  %258 = vmatprep.subr.mxu0 0.0
  %259 = vmatpush1.msra.mxu0 0.0
  %260 = vmatprep.subr.mxu0 0.0
  %261 = vmatpush1.msra.mxu0 0.0
  %262 = vmatprep.subr.mxu0 0.0
  %263 = vmatpush1.msra.mxu0 0.0
  %264 = vmatprep.subr.mxu0 0.0
  %265 = vmatpush1.msra.mxu0 0.0
  %266 = vmatprep.subr.mxu0 0.0
  %267 = vmatpush1.msra.mxu0 0.0
  %268 = vmatprep.subr.mxu0 0.0
  %269 = vmatpush1.msra.mxu0 0.0
  %270 = vmatprep.subr.mxu0 0.0
  %271 = vmatpush1.msra.mxu0 0.0
  %272 = vmatprep.subr.mxu0 0.0
  %273 = vmatpush1.msra.mxu0 0.0
  %274 = vmatprep.subr.mxu0 0.0
  %275 = vmatpush1.msra.mxu0 0.0
  %276 = vmatprep.subr.mxu0 0.0
  %277 = vmatpush1.msra.mxu0 0.0
  %278 = vmatprep.subr.mxu0 0.0
  %279 = vmatpush1.msra.mxu0 0.0
  %280 = vmatprep.subr.mxu0 0.0
  %281 = vmatpush1.msra.mxu0 0.0
  %282 = vmatprep.subr.mxu0 0.0
  %283 = vmatpush1.msra.mxu0 0.0
  %284 = vmatprep.subr.mxu0 0.0
  %285 = vmatpush1.msra.mxu0 0.0
  %286 = vmatprep.subr.mxu0 0.0
  %287 = vmatpush1.msra.mxu0 0.0
  %288 = vmatprep.subr.mxu0 0.0
  %289 = vmatpush1.msra.mxu0 0.0
  %290 = vmatprep.subr.mxu0 0.0
  %291 = vmatpush1.msra.mxu0 0.0
  %292 = vmatprep.subr.mxu0 0.0
  %293 = vmatpush1.msra.mxu0 0.0
  %294 = vmatprep.subr.mxu0 0.0
  %295 = vmatpush1.msra.mxu0 0.0
  %296 = vmatprep.mubr.f32.mxu0 0.0
  %297 = vmatmul.mubr.f32.gmra.mrb[0].mxu0 %v152
  %v298 = vpop.f32.mrb[0].mxu0
  %v299 = vadd.f32 %v148, %v298
  %v300 = vpop.f32.mrb[0].mxu0
  %301 = vdwg.mxu0
  %s302 = scalar_lea.vmem %s3, 8
  %303 = vst.msk [vmem:[%s302] sm:$0xff] %vm227, %v299
  // Predicated region
  $region14: #{upsample1d_layer.1} parent=0 // pred_check
    _
  $region15: #{upsample1d_layer.1} parent=0 // pred_check_branch
    %305 = sbr.rel (0) target = $region17
  $region16: #{upsample1d_layer.1} parent=0 // pred_region
    _
  $region17: #{upsample1d_layer.1} parent=0 // pred_fallthru
    _
  // Predicated region
  $region18: #{upsample1d_layer.1} parent=0 // pred_check
    _
  $region19: #{upsample1d_layer.1} parent=0 // pred_check_branch
    %307 = sbr.rel (0) target = $region21
  $region20: #{upsample1d_layer.1} parent=0 // pred_region
    _
  $region21: #{upsample1d_layer.1} parent=0 // pred_fallthru
    _

</llo_original>
